<compile_context>
chip_gen: v7x
topology: tpu7x:2x2x1
jax: 0.10.0
libtpu: 0.0.40
codegen_flags: <defaults>
</compile_context>

<pallas_src>
import functools

import jax
import jax.numpy as jnp
from jax import lax
from jax.experimental import pallas as pl
from jax.experimental.pallas import tpu as pltpu


def _residual_block_kernel(x_ref, w1_ref, b1_ref, w2_ref, b2_ref,
                           wd_ref, bd_ref, o_ref, *, has_downsample: bool):
    """One batch element per grid step.

    x_ref  : (1, H, W*Cin)        bf16, NHWC with (W, C) fused on the lane axis
    w1_ref : (W*Cin, 3*W*Cout)    bf16 banded conv1 weights (3 ky taps along N)
    b1_ref : (1, W*Cout)          f32  conv1 bias tiled over W
    w2_ref : (W*Cout, 3*W*Cout)   bf16 banded conv2 weights
    b2_ref : (1, W*Cout)          f32
    wd_ref : (W*Cin, W*Cout)      bf16 block-diagonal 1x1 downsample (unused if !has_downsample)
    bd_ref : (1, W*Cout)          f32
    o_ref  : (1, H, W*Cout)       f32
    """
    wco = o_ref.shape[2]                      # W*Cout (lane-dense, multiple of 128 here)
    x = x_ref[0]                              # (H, W*Cin) bf16

    def fused_conv3x3(inp_bf16, w_ref, b_ref):
        # One MXU contraction covering all (kx, Cin) taps for all three ky taps.
        t = jnp.dot(inp_bf16, w_ref[...],
                    preferred_element_type=jnp.float32)     # (H, 3*W*Cout) f32
        t0 = t[:, :wco]                        # contribution of input row y via ky=0
        t1 = t[:, wco:2 * wco]                 # ky=1
        t2 = t[:, 2 * wco:]                    # ky=2
        zrow = jnp.zeros((1, wco), jnp.float32)
        # out[y] = t0[y-1] + t1[y] + t2[y+1]  (zero rows handle the H padding)
        y = (t1
             + jnp.concatenate([zrow, t0[:-1, :]], axis=0)
             + jnp.concatenate([t2[1:, :], zrow], axis=0))
        return y + b_ref[...]                  # (1, W*Cout) broadcast over H

    # conv1 + ReLU
    y1 = jnp.maximum(fused_conv3x3(x, w1_ref, b1_ref), 0.0)
    # conv2 (consume y1 directly as bf16 -- no padded staging buffer)
    y2 = fused_conv3x3(y1.astype(jnp.bfloat16), w2_ref, b2_ref)

    # identity path
    if has_downsample:
        identity = (jnp.dot(x, wd_ref[...], preferred_element_type=jnp.float32)
                    + bd_ref[...])
    else:
        identity = x.astype(jnp.float32)       # Cin == Cout, same fused layout

    o_ref[0] = jnp.maximum(y2 + identity, 0.0).astype(o_ref.dtype)


def _make_banded_conv_weights(w_hwio, W):
    """(3, 3, Ci, Co) HWIO -> (W*Ci, 3*W*Co) banded matrix.

    Column block ky covers output positions; B_ky[x_in*Ci+ci, x_out*Co+co] =
    w[ky, x_in-x_out+1, ci, co] inside the band, 0 outside (this implements the
    zero padding along W).  The three ky blocks are concatenated along N.
    """
    KH, KW, Ci, Co = w_hwio.shape
    x_in = jnp.arange(W)[:, None]
    x_out = jnp.arange(W)[None, :]
    kx = x_in - x_out + 1                              # (W, W)
    valid = (kx >= 0) & (kx < KW)
    kx_c = jnp.clip(kx, 0, KW - 1)
    bands = []
    for ky in range(KH):
        wk = w_hwio[ky]                                # (KW, Ci, Co)
        g = wk[kx_c]                                   # (W, W, Ci, Co)
        g = jnp.where(valid[:, :, None, None], g, 0.0)
        band = jnp.transpose(g, (0, 2, 1, 3)).reshape(W * Ci, W * Co)
        bands.append(band)
    return jnp.concatenate(bands, axis=1)              # (W*Ci, 3*W*Co)


def _make_blockdiag_1x1(wd, W):
    """(Ci, Co) 1x1 conv weight -> block-diagonal (W*Ci, W*Co) for the fused layout."""
    Ci, Co = wd.shape
    eye = jnp.eye(W, dtype=wd.dtype)                   # (W, W)
    blk = eye[:, None, :, None] * wd[None, :, None, :]  # (W, Ci, W, Co)
    return blk.reshape(W * Ci, W * Co)


def residual_block(x_nchw, w1_hwio, b1, w2_hwio, b2, wd=None, bd=None):
    """ResidualBlock forward on an NCHW float32 input (conv weights in HWIO)."""
    N, Cin, H, W = x_nchw.shape
    Cout = w1_hwio.shape[-1]
    has_downsample = wd is not None
    if not has_downsample:
        assert Cin == Cout
        wd = jnp.zeros((Cin, Cout), jnp.float32)       # dummy (unused in kernel)
        bd = jnp.zeros((Cout,), jnp.float32)

    # NCHW -> (N, H, W*Cin), bf16 for the MXU (no spatial padding needed).
    x_fused = (jnp.transpose(x_nchw, (0, 2, 3, 1))
               .reshape(N, H, W * Cin)
               .astype(jnp.bfloat16))

    wc1 = _make_banded_conv_weights(w1_hwio.astype(jnp.float32), W).astype(jnp.bfloat16)
    wc2 = _make_banded_conv_weights(w2_hwio.astype(jnp.float32), W).astype(jnp.bfloat16)
    wdb = _make_blockdiag_1x1(wd.astype(jnp.float32), W).astype(jnp.bfloat16)

    b1_row = jnp.tile(b1.astype(jnp.float32), W).reshape(1, W * Cout)
    b2_row = jnp.tile(b2.astype(jnp.float32), W).reshape(1, W * Cout)
    bd_row = jnp.tile(bd.astype(jnp.float32), W).reshape(1, W * Cout)

    kernel = functools.partial(_residual_block_kernel,
                               has_downsample=has_downsample)

    out_fused = pl.pallas_call(
        kernel,
        out_shape=jax.ShapeDtypeStruct((N, H, W * Cout), jnp.float32),
        grid_spec=pltpu.PrefetchScalarGridSpec(
            num_scalar_prefetch=0,
            grid=(N,),
            in_specs=[
                pl.BlockSpec((1, H, W * Cin), lambda n: (n, 0, 0)),
                pl.BlockSpec((W * Cin, 3 * W * Cout), lambda n: (0, 0)),
                pl.BlockSpec((1, W * Cout), lambda n: (0, 0)),
                pl.BlockSpec((W * Cout, 3 * W * Cout), lambda n: (0, 0)),
                pl.BlockSpec((1, W * Cout), lambda n: (0, 0)),
                pl.BlockSpec((W * Cin, W * Cout), lambda n: (0, 0)),
                pl.BlockSpec((1, W * Cout), lambda n: (0, 0)),
            ],
            out_specs=pl.BlockSpec((1, H, W * Cout), lambda n: (n, 0, 0)),
        ),
        compiler_params=pltpu.CompilerParams(
            dimension_semantics=("parallel",),
            vmem_limit_bytes=32 * 1024 * 1024,
        ),
    )(x_fused, wc1, b1_row, wc2, b2_row, wdb, bd_row)

    # (N, H, W*Cout) -> NCHW to match the PyTorch module interface.
    return jnp.transpose(out_fused.reshape(N, H, W, Cout), (0, 3, 1, 2))


def _reference(x_nchw, w1_hwio, b1, w2_hwio, b2, wd, bd):
    """Pure-JAX reference mirroring the kernel's bf16-operand / f32-accumulate numerics."""
    bf = lambda a: a.astype(jnp.bfloat16).astype(jnp.float32)

    def conv3x3(x, w_hwio, b):
        w_oihw = jnp.transpose(bf(w_hwio), (3, 2, 0, 1))
        y = lax.conv_general_dilated(
            x, w_oihw, window_strides=(1, 1), padding=((1, 1), (1, 1)),
            dimension_numbers=("NCHW", "OIHW", "NCHW"),
            precision=lax.Precision.HIGHEST)
        return y + b.reshape(1, -1, 1, 1)

    xb = bf(x_nchw)
    out = jnp.maximum(conv3x3(xb, w1_hwio, b1), 0.0)
    out = conv3x3(bf(out), w2_hwio, b2)
    if wd is not None:
        w_oihw = jnp.transpose(bf(wd), (1, 0)).reshape(wd.shape[1], wd.shape[0], 1, 1)
        identity = lax.conv_general_dilated(
            xb, w_oihw, window_strides=(1, 1), padding=((0, 0), (0, 0)),
            dimension_numbers=("NCHW", "OIHW", "NCHW"),
            precision=lax.Precision.HIGHEST) + bd.reshape(1, -1, 1, 1)
    else:
        identity = xb
    return jnp.maximum(out + identity, 0.0)


if __name__ == "__main__":
    N, Cin, Cout, H, W = 2, 4, 8, 16, 16

    key = jax.random.PRNGKey(0)
    keys = jax.random.split(key, 12)
    (kx, k1, kb1, k2, kb2, kd, kbd, kx2, k1b, kb1b, k2b, kb2b) = keys

    # --- case 1: in_channels != out_channels (downsample path) ---
    x = jax.random.normal(kx, (N, Cin, H, W), jnp.float32)
    w1 = jax.random.normal(k1, (3, 3, Cin, Cout), jnp.float32) * 0.1   # HWIO
    b1 = jax.random.normal(kb1, (Cout,), jnp.float32) * 0.1
    w2 = jax.random.normal(k2, (3, 3, Cout, Cout), jnp.float32) * 0.1  # HWIO
    b2 = jax.random.normal(kb2, (Cout,), jnp.float32) * 0.1
    wd = jax.random.normal(kd, (Cin, Cout), jnp.float32) * 0.1         # 1x1 conv
    bd = jax.random.normal(kbd, (Cout,), jnp.float32) * 0.1

    out = jax.block_until_ready(residual_block(x, w1, b1, w2, b2, wd, bd))
    ref = _reference(x, w1, b1, w2, b2, wd, bd)
    assert out.shape == (N, Cout, H, W)
    assert jnp.allclose(out, ref, atol=2e-3, rtol=2e-3), \
        f"downsample case: max abs err {jnp.max(jnp.abs(out - ref))}"

    # --- case 2: in_channels == out_channels (pure identity path) ---
    C = Cout
    x2 = jax.random.normal(kx2, (N, C, H, W), jnp.float32)
    w1b = jax.random.normal(k1b, (3, 3, C, C), jnp.float32) * 0.1
    b1b = jax.random.normal(kb1b, (C,), jnp.float32) * 0.1
    w2b = jax.random.normal(k2b, (3, 3, C, C), jnp.float32) * 0.1
    b2b = jax.random.normal(kb2b, (C,), jnp.float32) * 0.1

    out2 = jax.block_until_ready(residual_block(x2, w1b, b1b, w2b, b2b))
    ref2 = _reference(x2, w1b, b1b, w2b, b2b, None, None)
    assert out2.shape == (N, C, H, W)
    assert jnp.allclose(out2, ref2, atol=2e-3, rtol=2e-3), \
        f"identity case: max abs err {jnp.max(jnp.abs(out2 - ref2))}"

    print("KERNEL_OK")
</pallas_src>

<mosaic_0001>
module attributes {stable_mosaic.version = 11 : i64} {
  func.func @_residual_block_kernel(%arg0: i32, %arg1: memref<1x16x64xbf16, #tpu.memory_space<vmem>>, %arg2: memref<64x384xbf16, #tpu.memory_space<vmem>>, %arg3: memref<1x128xf32, #tpu.memory_space<vmem>>, %arg4: memref<128x384xbf16, #tpu.memory_space<vmem>>, %arg5: memref<1x128xf32, #tpu.memory_space<vmem>>, %arg6: memref<64x128xbf16, #tpu.memory_space<vmem>>, %arg7: memref<1x128xf32, #tpu.memory_space<vmem>>, %arg8: memref<1x16x128xf32, #tpu.memory_space<vmem>>) attributes {dimension_semantics = [#tpu.dimension_semantics<parallel>], iteration_bounds = array<i64: 2>, scalar_prefetch = 0 : i64, scratch_operands = 0 : i64, tpu.core_type = #tpu.core_type<tc>, window_params = [{transform_indices = @transform_0, window_bounds = array<i64: 1, 16, 64>}, {pipeline_mode = #tpu.pipeline_mode<synchronous>, transform_indices = @transform_1, window_bounds = array<i64: 64, 384>}, {pipeline_mode = #tpu.pipeline_mode<synchronous>, transform_indices = @transform_2, window_bounds = array<i64: 1, 128>}, {pipeline_mode = #tpu.pipeline_mode<synchronous>, transform_indices = @transform_3, window_bounds = array<i64: 128, 384>}, {pipeline_mode = #tpu.pipeline_mode<synchronous>, transform_indices = @transform_4, window_bounds = array<i64: 1, 128>}, {pipeline_mode = #tpu.pipeline_mode<synchronous>, transform_indices = @transform_5, window_bounds = array<i64: 64, 128>}, {pipeline_mode = #tpu.pipeline_mode<synchronous>, transform_indices = @transform_6, window_bounds = array<i64: 1, 128>}, {transform_indices = @transform_7, window_bounds = array<i64: 1, 16, 128>}]} {
    %c0 = arith.constant 0 : index
    %c0_0 = arith.constant 0 : index
    %c0_1 = arith.constant 0 : index
    %0 = vector.load %arg1[%c0, %c0_0, %c0_1] : memref<1x16x64xbf16, #tpu.memory_space<vmem>>, vector<1x16x64xbf16>
    %1 = vector.shape_cast %0 : vector<1x16x64xbf16> to vector<16x64xbf16>
    %c0_2 = arith.constant 0 : index
    %c0_3 = arith.constant 0 : index
    %2 = vector.load %arg2[%c0_2, %c0_3] : memref<64x384xbf16, #tpu.memory_space<vmem>>, vector<64x384xbf16>
    %cst = arith.constant dense<0.000000e+00> : vector<16x384xf32>
    %3 = tpu.matmul %1, %2, %cst {dimension_numbers = #tpu.dot_dimension_numbers<[1], [0], [0], [1], [0, 0, 1, 1], [], []>} : vector<16x64xbf16>, vector<64x384xbf16>, vector<16x384xf32> -> vector<16x384xf32>
    %4 = vector.extract_strided_slice %3 {offsets = [0, 0], sizes = [16, 128], strides = [1, 1]} : vector<16x384xf32> to vector<16x128xf32>
    %5 = vector.extract_strided_slice %3 {offsets = [0, 128], sizes = [16, 128], strides = [1, 1]} : vector<16x384xf32> to vector<16x128xf32>
    %6 = vector.extract_strided_slice %3 {offsets = [0, 256], sizes = [16, 128], strides = [1, 1]} : vector<16x384xf32> to vector<16x128xf32>
    %cst_4 = arith.constant 0.000000e+00 : f32
    %7 = vector.broadcast %cst_4 : f32 to vector<1x128xf32>
    %8 = vector.extract_strided_slice %4 {offsets = [0, 0], sizes = [15, 128], strides = [1, 1]} : vector<16x128xf32> to vector<15x128xf32>
    %9 = tpu.concatenate %7, %8 in 0 : vector<1x128xf32>, vector<15x128xf32> -> vector<16x128xf32>
    %10 = arith.addf %5, %9 : vector<16x128xf32>
    %11 = vector.extract_strided_slice %6 {offsets = [1, 0], sizes = [15, 128], strides = [1, 1]} : vector<16x128xf32> to vector<15x128xf32>
    %12 = tpu.concatenate %11, %7 in 0 : vector<15x128xf32>, vector<1x128xf32> -> vector<16x128xf32>
    %13 = arith.addf %10, %12 : vector<16x128xf32>
    %c0_5 = arith.constant 0 : index
    %c0_6 = arith.constant 0 : index
    %14 = vector.load %arg3[%c0_5, %c0_6] : memref<1x128xf32, #tpu.memory_space<vmem>>, vector<1x128xf32>
    %15 = vector.broadcast %14 : vector<1x128xf32> to vector<16x128xf32>
    %16 = arith.addf %13, %15 : vector<16x128xf32>
    %cst_7 = arith.constant 0.000000e+00 : f32
    %17 = vector.broadcast %cst_7 : f32 to vector<16x128xf32>
    %18 = arith.maximumf %16, %17 : vector<16x128xf32>
    %19 = arith.truncf %18 : vector<16x128xf32> to vector<16x128xbf16>
    %c0_8 = arith.constant 0 : index
    %c0_9 = arith.constant 0 : index
    %20 = vector.load %arg4[%c0_8, %c0_9] : memref<128x384xbf16, #tpu.memory_space<vmem>>, vector<128x384xbf16>
    %cst_10 = arith.constant dense<0.000000e+00> : vector<16x384xf32>
    %21 = tpu.matmul %19, %20, %cst_10 {dimension_numbers = #tpu.dot_dimension_numbers<[1], [0], [0], [1], [0, 0, 1, 1], [], []>} : vector<16x128xbf16>, vector<128x384xbf16>, vector<16x384xf32> -> vector<16x384xf32>
    %22 = vector.extract_strided_slice %21 {offsets = [0, 0], sizes = [16, 128], strides = [1, 1]} : vector<16x384xf32> to vector<16x128xf32>
    %23 = vector.extract_strided_slice %21 {offsets = [0, 128], sizes = [16, 128], strides = [1, 1]} : vector<16x384xf32> to vector<16x128xf32>
    %24 = vector.extract_strided_slice %21 {offsets = [0, 256], sizes = [16, 128], strides = [1, 1]} : vector<16x384xf32> to vector<16x128xf32>
    %cst_11 = arith.constant 0.000000e+00 : f32
    %25 = vector.broadcast %cst_11 : f32 to vector<1x128xf32>
    %26 = vector.extract_strided_slice %22 {offsets = [0, 0], sizes = [15, 128], strides = [1, 1]} : vector<16x128xf32> to vector<15x128xf32>
    %27 = tpu.concatenate %25, %26 in 0 : vector<1x128xf32>, vector<15x128xf32> -> vector<16x128xf32>
    %28 = arith.addf %23, %27 : vector<16x128xf32>
    %29 = vector.extract_strided_slice %24 {offsets = [1, 0], sizes = [15, 128], strides = [1, 1]} : vector<16x128xf32> to vector<15x128xf32>
    %30 = tpu.concatenate %29, %25 in 0 : vector<15x128xf32>, vector<1x128xf32> -> vector<16x128xf32>
    %31 = arith.addf %28, %30 : vector<16x128xf32>
    %c0_12 = arith.constant 0 : index
    %c0_13 = arith.constant 0 : index
    %32 = vector.load %arg5[%c0_12, %c0_13] : memref<1x128xf32, #tpu.memory_space<vmem>>, vector<1x128xf32>
    %33 = vector.broadcast %32 : vector<1x128xf32> to vector<16x128xf32>
    %34 = arith.addf %31, %33 : vector<16x128xf32>
    %c0_14 = arith.constant 0 : index
    %c0_15 = arith.constant 0 : index
    %35 = vector.load %arg6[%c0_14, %c0_15] : memref<64x128xbf16, #tpu.memory_space<vmem>>, vector<64x128xbf16>
    %cst_16 = arith.constant dense<0.000000e+00> : vector<16x128xf32>
    %36 = tpu.matmul %1, %35, %cst_16 {dimension_numbers = #tpu.dot_dimension_numbers<[1], [0], [0], [1], [0, 0, 1, 1], [], []>} : vector<16x64xbf16>, vector<64x128xbf16>, vector<16x128xf32> -> vector<16x128xf32>
    %c0_17 = arith.constant 0 : index
    %c0_18 = arith.constant 0 : index
    %37 = vector.load %arg7[%c0_17, %c0_18] : memref<1x128xf32, #tpu.memory_space<vmem>>, vector<1x128xf32>
    %38 = vector.broadcast %37 : vector<1x128xf32> to vector<16x128xf32>
    %39 = arith.addf %36, %38 : vector<16x128xf32>
    %40 = arith.addf %34, %39 : vector<16x128xf32>
    %cst_19 = arith.constant 0.000000e+00 : f32
    %41 = vector.broadcast %cst_19 : f32 to vector<16x128xf32>
    %42 = arith.maximumf %40, %41 : vector<16x128xf32>
    %c0_20 = arith.constant 0 : index
    %c0_21 = arith.constant 0 : index
    %c0_22 = arith.constant 0 : index
    %43 = vector.load %arg8[%c0_20, %c0_21, %c0_22] : memref<1x16x128xf32, #tpu.memory_space<vmem>>, vector<1x16x128xf32>
    %44 = vector.shape_cast %43 : vector<1x16x128xf32> to vector<16x128xf32>
    %45 = vector.shape_cast %42 : vector<16x128xf32> to vector<1x16x128xf32>
    tpu.vector_store %arg8[%c0_20, %c0_21, %c0_22], %45 {strides = array<i32>} : memref<1x16x128xf32, #tpu.memory_space<vmem>>, vector<1x16x128xf32>,
    return
  }
  func.func @transform_0(%arg0: i32) -> (i32, i32, i32) {
    %c0_i32 = arith.constant 0 : i32
    %c0_i32_0 = arith.constant 0 : i32
    %c0_i32_1 = arith.constant 0 : i32
    return %arg0, %c0_i32, %c0_i32_0 : i32, i32, i32
  }
  func.func @transform_1(%arg0: i32) -> (i32, i32) {
    %c0_i32 = arith.constant 0 : i32
    %c0_i32_0 = arith.constant 0 : i32
    %c0_i32_1 = arith.constant 0 : i32
    return %c0_i32, %c0_i32_0 : i32, i32
  }
  func.func @transform_2(%arg0: i32) -> (i32, i32) {
    %c0_i32 = arith.constant 0 : i32
    %c0_i32_0 = arith.constant 0 : i32
    %c0_i32_1 = arith.constant 0 : i32
    return %c0_i32, %c0_i32_0 : i32, i32
  }
  func.func @transform_3(%arg0: i32) -> (i32, i32) {
    %c0_i32 = arith.constant 0 : i32
    %c0_i32_0 = arith.constant 0 : i32
    %c0_i32_1 = arith.constant 0 : i32
    return %c0_i32, %c0_i32_0 : i32, i32
  }
  func.func @transform_4(%arg0: i32) -> (i32, i32) {
    %c0_i32 = arith.constant 0 : i32
    %c0_i32_0 = arith.constant 0 : i32
    %c0_i32_1 = arith.constant 0 : i32
    return %c0_i32, %c0_i32_0 : i32, i32
  }
  func.func @transform_5(%arg0: i32) -> (i32, i32) {
    %c0_i32 = arith.constant 0 : i32
    %c0_i32_0 = arith.constant 0 : i32
    %c0_i32_1 = arith.constant 0 : i32
    return %c0_i32, %c0_i32_0 : i32, i32
  }
  func.func @transform_6(%arg0: i32) -> (i32, i32) {
    %c0_i32 = arith.constant 0 : i32
    %c0_i32_0 = arith.constant 0 : i32
    %c0_i32_1 = arith.constant 0 : i32
    return %c0_i32, %c0_i32_0 : i32, i32
  }
  func.func @transform_7(%arg0: i32) -> (i32, i32, i32) {
    %c0_i32 = arith.constant 0 : i32
    %c0_i32_0 = arith.constant 0 : i32
    %c0_i32_1 = arith.constant 0 : i32
    return %arg0, %c0_i32, %c0_i32_0 : i32, i32, i32
  }
}

</mosaic_0001>

<llo_original>
// kernel: tpu_custom_call.1
$region0: #{tpu_custom_call.1}
  #allocation0 [shape = 'u32[]', space=smem, size = 0x4, offset = 0x4, fixed_abs, tag = 'smem constant byte address 0x4 - core index']
  #allocation1 [shape = 'u32[144,128]{1,0:T(1,128)}', space=vmem, size = 0x12000, scoped, tag = 'internal scratch']
  %s0 = inlined_call_operand.hbm [shape: bf16[2,16,64], index: 0, kind: input, shape index: {}]
  %s1 = inlined_call_operand.hbm [shape: bf16[64,384], index: 1, kind: input, shape index: {}]
  %s2 = inlined_call_operand.vmem [shape: f32[1,128], index: 2, kind: input, shape index: {}]
  %s3 = inlined_call_operand.hbm [shape: bf16[128,384], index: 3, kind: input, shape index: {}]
  %s4 = inlined_call_operand.vmem [shape: f32[1,128], index: 4, kind: input, shape index: {}]
  %s5 = inlined_call_operand.hbm [shape: bf16[64,128], index: 5, kind: input, shape index: {}]
  %s6 = inlined_call_operand.vmem [shape: f32[1,128], index: 6, kind: input, shape index: {}]
  %s7 = inlined_call_operand.hbm [shape: f32[2,16,128], index: 7, kind: output, shape index: {}]
  %s8 = sld [smem:[#allocation0]]
  $region77: #{tpu_custom_call.1} parent=0
    _
  %s10 = ssub.s32 1, %s8
  %s11 = scalar_select 0, %s10, %s8
  $region1: #{tpu_custom_call.1} parent=0
    #allocation2 [shape = 'u8[8192]{0}', space=vmem, size = 0x2000, scoped, tag = 'input window, operand 0']
    #allocation3 [shape = 's32[2]{0}', space=sflag, size = 0x8, scoped, tag = 'scoped memory for tpu_custom_call.1']
    #allocation4 [shape = 's32[2]{0}', space=sflag, size = 0x8, scoped, tag = 'scoped memory for tpu_custom_call.1']
    #allocation5 [shape = 'u8[49152]{0}', space=vmem, size = 0xc000, scoped, tag = 'input window, operand 1, single buffered']
    #allocation6 [shape = 's32[1]{0}', space=sflag, size = 0x4, scoped, tag = 'scoped memory for tpu_custom_call.1']
    #allocation7 [shape = 'u8[98304]{0}', space=vmem, size = 0x18000, scoped, tag = 'input window, operand 3, single buffered']
    #allocation8 [shape = 'u8[16384]{0}', space=vmem, size = 0x4000, scoped, tag = 'input window, operand 5, single buffered']
    #allocation9 [shape = 's32[1]{0}', space=sflag, size = 0x4, scoped, tag = 'scoped memory for tpu_custom_call.1']
    #allocation10 [shape = 'u8[16384]{0}', space=vmem, size = 0x4000, scoped, tag = 'output window, operand 0']
    %12 = vsyncpa [#allocation3], 0
    %s13 = scalar_lea.sflag [#allocation3], 1
    %14 = vsyncpa %s13, 0
    %15 = vsyncpa [#allocation6], 0
    %16 = vsyncpa [#allocation9], 0
    %17 = vsyncpa [#allocation4], 0
    %s18 = scalar_lea.sflag [#allocation4], 1
    %19 = vsyncpa %s18, 0
    loop: start=0, step=1, limit=4
    $region2: #{tpu_custom_call.1} parent=1 // loop_pre_header
      _
    $region3: #{tpu_custom_call.1} parent=1 // loop_header
      %s21 = sphi 0, %s25
      %p22 = scmp.ge.s32.totalorder %s21, 4
      %s31 = sphi 0, %s33
      %s34 = sphi 0, %s31
      %s35 = sphi 0, %s34
      %s51 = sphi 0, %s35
      %s55 = sphi 0, %s55
      %s57 = sphi 0, %s55
      %s58 = sphi 0, %s57
      %s72 = sphi 0, %s58
      %s76 = sphi 0, %s76
      %s78 = sphi 0, %s76
      %s79 = sphi 0, %s78
      %s93 = sphi 0, %s79
      %s97 = sphi 0, %s97
      %s99 = sphi 0, %s97
      %s100 = sphi 0, %s99
      %s114 = sphi 0, %s100
      %s118 = sphi 0, %s118
      %s120 = sphi 0, %s118
      %s121 = sphi 0, %s120
      %s135 = sphi 0, %s121
      %s139 = sphi 0, %s139
      %s141 = sphi 0, %s139
      %s142 = sphi 0, %s141
      %s156 = sphi 0, %s142
      %s160 = sphi 0, %s160
      %s162 = sphi 0, %s160
      %s163 = sphi 0, %s162
      %s177 = sphi 0, %s163
      %s183 = sphi 0, %s185
      %s186 = sphi 0, %s183
      %s187 = sphi 0, %s186
      %s203 = sphi 0, %s187
    $region4: #{tpu_custom_call.1} parent=1 // loop_header_branch
      %24 = sbr.rel (%p22) target = $region8
    $region5: #{tpu_custom_call.1} parent=1 // loop_body
      %s26 = ssub.s32 %s21, 1
      %s27 = ssub.s32 %s21, 2
      %s28 = sadd.s32 %s21, 1
      %s29 = ssub.s32 %s21, %s28
      %p30 = scmp.eq.s32.totalorder %s29, 0
      %s32 = sadd.s32 %s31, 1
      %s33 = scalar_select %p30, %s31, %s32
      %p36 = pneg %p30
      %p37 = scmp.eq.s32.totalorder %s21, 1
      %p38 = por %p36, %p37
      %p39 = scmp.ne.s32.totalorder %s31, %s34
      %p40 = scmp.eq.s32.totalorder %s21, 0
      %p41 = por %p39, %p40
      %p42 = scmp.ne.s32.totalorder %s31, %s34
      %p43 = scmp.eq.s32.totalorder %s26, 1
      %p44 = por %p42, %p43
      %p45 = scmp.ne.s32.totalorder %s34, %s35
      %p46 = scmp.eq.s32.totalorder %s26, 0
      %p47 = por %p45, %p46
      %p48 = scmp.ne.s32.totalorder %s34, %s35
      %p49 = scmp.eq.s32.totalorder %s27, 1
      %p50 = por %p48, %p49
      %p52 = scmp.ne.s32.totalorder %s35, %s51
      %p53 = scmp.eq.s32.totalorder %s27, 0
      %p54 = por %p52, %p53
      %s56 = sadd.s32 %s55, 1
      %p59 = scmp.eq.s32.totalorder %s21, 1
      %p60 = scmp.ne.s32.totalorder %s55, %s57
      %p61 = scmp.eq.s32.totalorder %s21, 0
      %p62 = por %p60, %p61
      %p63 = scmp.ne.s32.totalorder %s55, %s57
      %p64 = scmp.eq.s32.totalorder %s26, 1
      %p65 = por %p63, %p64
      %p66 = scmp.ne.s32.totalorder %s57, %s58
      %p67 = scmp.eq.s32.totalorder %s26, 0
      %p68 = por %p66, %p67
      %p69 = scmp.ne.s32.totalorder %s57, %s58
      %p70 = scmp.eq.s32.totalorder %s27, 1
      %p71 = por %p69, %p70
      %p73 = scmp.ne.s32.totalorder %s58, %s72
      %p74 = scmp.eq.s32.totalorder %s27, 0
      %p75 = por %p73, %p74
      %s77 = sadd.s32 %s76, 1
      %p80 = scmp.eq.s32.totalorder %s21, 1
      %p81 = scmp.ne.s32.totalorder %s76, %s78
      %p82 = scmp.eq.s32.totalorder %s21, 0
      %p83 = por %p81, %p82
      %p84 = scmp.ne.s32.totalorder %s76, %s78
      %p85 = scmp.eq.s32.totalorder %s26, 1
      %p86 = por %p84, %p85
      %p87 = scmp.ne.s32.totalorder %s78, %s79
      %p88 = scmp.eq.s32.totalorder %s26, 0
      %p89 = por %p87, %p88
      %p90 = scmp.ne.s32.totalorder %s78, %s79
      %p91 = scmp.eq.s32.totalorder %s27, 1
      %p92 = por %p90, %p91
      %p94 = scmp.ne.s32.totalorder %s79, %s93
      %p95 = scmp.eq.s32.totalorder %s27, 0
      %p96 = por %p94, %p95
      %s98 = sadd.s32 %s97, 1
      %p101 = scmp.eq.s32.totalorder %s21, 1
      %p102 = scmp.ne.s32.totalorder %s97, %s99
      %p103 = scmp.eq.s32.totalorder %s21, 0
      %p104 = por %p102, %p103
      %p105 = scmp.ne.s32.totalorder %s97, %s99
      %p106 = scmp.eq.s32.totalorder %s26, 1
      %p107 = por %p105, %p106
      %p108 = scmp.ne.s32.totalorder %s99, %s100
      %p109 = scmp.eq.s32.totalorder %s26, 0
      %p110 = por %p108, %p109
      %p111 = scmp.ne.s32.totalorder %s99, %s100
      %p112 = scmp.eq.s32.totalorder %s27, 1
      %p113 = por %p111, %p112
      %p115 = scmp.ne.s32.totalorder %s100, %s114
      %p116 = scmp.eq.s32.totalorder %s27, 0
      %p117 = por %p115, %p116
      %s119 = sadd.s32 %s118, 1
      %p122 = scmp.eq.s32.totalorder %s21, 1
      %p123 = scmp.ne.s32.totalorder %s118, %s120
      %p124 = scmp.eq.s32.totalorder %s21, 0
      %p125 = por %p123, %p124
      %p126 = scmp.ne.s32.totalorder %s118, %s120
      %p127 = scmp.eq.s32.totalorder %s26, 1
      %p128 = por %p126, %p127
      %p129 = scmp.ne.s32.totalorder %s120, %s121
      %p130 = scmp.eq.s32.totalorder %s26, 0
      %p131 = por %p129, %p130
      %p132 = scmp.ne.s32.totalorder %s120, %s121
      %p133 = scmp.eq.s32.totalorder %s27, 1
      %p134 = por %p132, %p133
      %p136 = scmp.ne.s32.totalorder %s121, %s135
      %p137 = scmp.eq.s32.totalorder %s27, 0
      %p138 = por %p136, %p137
      %s140 = sadd.s32 %s139, 1
      %p143 = scmp.eq.s32.totalorder %s21, 1
      %p144 = scmp.ne.s32.totalorder %s139, %s141
      %p145 = scmp.eq.s32.totalorder %s21, 0
      %p146 = por %p144, %p145
      %p147 = scmp.ne.s32.totalorder %s139, %s141
      %p148 = scmp.eq.s32.totalorder %s26, 1
      %p149 = por %p147, %p148
      %p150 = scmp.ne.s32.totalorder %s141, %s142
      %p151 = scmp.eq.s32.totalorder %s26, 0
      %p152 = por %p150, %p151
      %p153 = scmp.ne.s32.totalorder %s141, %s142
      %p154 = scmp.eq.s32.totalorder %s27, 1
      %p155 = por %p153, %p154
      %p157 = scmp.ne.s32.totalorder %s142, %s156
      %p158 = scmp.eq.s32.totalorder %s27, 0
      %p159 = por %p157, %p158
      %s161 = sadd.s32 %s160, 1
      %p164 = scmp.eq.s32.totalorder %s21, 1
      %p165 = scmp.ne.s32.totalorder %s160, %s162
      %p166 = scmp.eq.s32.totalorder %s21, 0
      %p167 = por %p165, %p166
      %p168 = scmp.ne.s32.totalorder %s160, %s162
      %p169 = scmp.eq.s32.totalorder %s26, 1
      %p170 = por %p168, %p169
      %p171 = scmp.ne.s32.totalorder %s162, %s163
      %p172 = scmp.eq.s32.totalorder %s26, 0
      %p173 = por %p171, %p172
      %p174 = scmp.ne.s32.totalorder %s162, %s163
      %p175 = scmp.eq.s32.totalorder %s27, 1
      %p176 = por %p174, %p175
      %p178 = scmp.ne.s32.totalorder %s163, %s177
      %p179 = scmp.eq.s32.totalorder %s27, 0
      %p180 = por %p178, %p179
      %s181 = ssub.s32 %s21, %s28
      %p182 = scmp.eq.s32.totalorder %s181, 0
      %s184 = sadd.s32 %s183, 1
      %s185 = scalar_select %p182, %s183, %s184
      %p188 = pneg %p182
      %p189 = scmp.eq.s32.totalorder %s21, 1
      %p190 = por %p188, %p189
      %p191 = scmp.ne.s32.totalorder %s183, %s186
      %p192 = scmp.eq.s32.totalorder %s21, 0
      %p193 = por %p191, %p192
      %p194 = scmp.ne.s32.totalorder %s183, %s186
      %p195 = scmp.eq.s32.totalorder %s26, 1
      %p196 = por %p194, %p195
      %p197 = scmp.ne.s32.totalorder %s186, %s187
      %p198 = scmp.eq.s32.totalorder %s26, 0
      %p199 = por %p197, %p198
      %p200 = scmp.ne.s32.totalorder %s186, %s187
      %p201 = scmp.eq.s32.totalorder %s27, 1
      %p202 = por %p200, %p201
      %p204 = scmp.ne.s32.totalorder %s187, %s203
      %p205 = scmp.eq.s32.totalorder %s27, 0
      %p206 = por %p204, %p205
      %p207 = scmp.le.s32.totalorder 1, %s21
      %p208 = scmp.lt.s32.totalorder %s21, 3
      %p209 = pnand %p207, %p208
      %p210 = pneg %p209
      // Predicated region
      $region9: #{tpu_custom_call.1} parent=5 // pred_check
        _
      $region10: #{tpu_custom_call.1} parent=5 // pred_check_branch
        %212 = sbr.rel (%p209) target = $region12
      $region11: #{tpu_custom_call.1} parent=5 // pred_region
        %s213 = ssub.s32 %s21, 1
        // Predicated region
        $region13: #{tpu_custom_call.1} parent=11 // pred_check
          %p214 = pneg %p68
        $region14: #{tpu_custom_call.1} parent=11 // pred_check_branch
          %216 = sbr.rel (%p214) target = $region16
        $region15: #{tpu_custom_call.1} parent=11 // pred_region
          %s218 = ssub.s32 1536, 1536
          %219 = vsyncadd [#allocation6], %s218
          %s220 = sshll.u32 [#allocation5], 4
          %s221 = int_to_ptr.vmem [resolvable:$true] %s220
          %226 = dma.hbm_to_vmem [thread:$0]  %s1, 1536, %s221, [#allocation6], 192, 192, 12
        $region16: #{tpu_custom_call.1} parent=11 // pred_fallthru
          _
        // Predicated region
        $region17: #{tpu_custom_call.1} parent=11 // pred_check
          %p227 = pneg %p89
        $region18: #{tpu_custom_call.1} parent=11 // pred_check_branch
          %229 = sbr.rel (%p227) target = $region20
        $region19: #{tpu_custom_call.1} parent=11 // pred_region
          _
        $region20: #{tpu_custom_call.1} parent=11 // pred_fallthru
          _
        // Predicated region
        $region21: #{tpu_custom_call.1} parent=11 // pred_check
          %p230 = pneg %p110
        $region22: #{tpu_custom_call.1} parent=11 // pred_check_branch
          %232 = sbr.rel (%p230) target = $region24
        $region23: #{tpu_custom_call.1} parent=11 // pred_region
          %s234 = ssub.s32 3072, 3072
          %235 = vsyncadd [#allocation6], %s234
          %s236 = sshll.u32 [#allocation7], 4
          %s237 = int_to_ptr.vmem [resolvable:$true] %s236
          %242 = dma.hbm_to_vmem [thread:$0]  %s3, 3072, %s237, [#allocation6], 192, 192, 12
        $region24: #{tpu_custom_call.1} parent=11 // pred_fallthru
          _
        // Predicated region
        $region25: #{tpu_custom_call.1} parent=11 // pred_check
          %p243 = pneg %p131
        $region26: #{tpu_custom_call.1} parent=11 // pred_check_branch
          %245 = sbr.rel (%p243) target = $region28
        $region27: #{tpu_custom_call.1} parent=11 // pred_region
          _
        $region28: #{tpu_custom_call.1} parent=11 // pred_fallthru
          _
        // Predicated region
        $region29: #{tpu_custom_call.1} parent=11 // pred_check
          %p246 = pneg %p152
        $region30: #{tpu_custom_call.1} parent=11 // pred_check_branch
          %248 = sbr.rel (%p246) target = $region32
        $region31: #{tpu_custom_call.1} parent=11 // pred_region
          %s250 = ssub.s32 512, 512
          %251 = vsyncadd [#allocation9], %s250
          %s252 = sshll.u32 [#allocation8], 4
          %s253 = int_to_ptr.vmem [resolvable:$true] %s252
          %258 = dma.hbm_to_vmem [thread:$0]  %s5, 512, %s253, [#allocation9], 64, 64, 4
        $region32: #{tpu_custom_call.1} parent=11 // pred_fallthru
          _
        // Predicated region
        $region33: #{tpu_custom_call.1} parent=11 // pred_check
          %p259 = pneg %p173
        $region34: #{tpu_custom_call.1} parent=11 // pred_check_branch
          %261 = sbr.rel (%p259) target = $region36
        $region35: #{tpu_custom_call.1} parent=11 // pred_region
          _
        $region36: #{tpu_custom_call.1} parent=11 // pred_fallthru
          _
      $region12: #{tpu_custom_call.1} parent=5 // pred_fallthru
        _
      %p262 = scmp.lt.s32.totalorder %s21, 2
      // Predicated region
      $region37: #{tpu_custom_call.1} parent=5 // pred_check
        %p263 = pneg %p262
      $region38: #{tpu_custom_call.1} parent=5 // pred_check_branch
        %265 = sbr.rel (%p263) target = $region40
      $region39: #{tpu_custom_call.1} parent=5 // pred_region
        // Predicated region
        $region41: #{tpu_custom_call.1} parent=39 // pred_check
          %p266 = pneg %p41
        $region42: #{tpu_custom_call.1} parent=39 // pred_check_branch
          %268 = sbr.rel (%p266) target = $region44
        $region43: #{tpu_custom_call.1} parent=39 // pred_region
          %s269 = sand.u32 %s31, 1
          %s270 = scalar_lea.sflag [#allocation3], %s269
          %s271 = sand.u32 %s31, 1
          %s272 = smul.addr %s271, 8
          %s273 = scalar_lea.vmem [#allocation2], %s272
          %s275 = ssub.s32 128, 128
          %276 = vsyncadd %s270, %s275
          %s277 = smul.addr %s21, 2
          %s278 = smul.addr %s277, 64
          %s279 = scalar_lea.hbm %s0, %s278
          %s280 = sshll.u32 %s273, 4
          %s281 = int_to_ptr.vmem [resolvable:$true] %s280
          %286 = dma.hbm_to_vmem [thread:$0]  %s279, 128, %s281, %s270, 64, 64, 4
        $region44: #{tpu_custom_call.1} parent=39 // pred_fallthru
          _
      $region40: #{tpu_custom_call.1} parent=5 // pred_fallthru
        _
      %p287 = scmp.le.s32.totalorder 1, %s21
      %p288 = scmp.lt.s32.totalorder %s21, 3
      %p289 = pnand %p287, %p288
      %p290 = pneg %p289
      // Predicated region
      $region45: #{tpu_custom_call.1} parent=5 // pred_check
        _
      $region46: #{tpu_custom_call.1} parent=5 // pred_check_branch
        %292 = sbr.rel (%p289) target = $region48
      $region47: #{tpu_custom_call.1} parent=5 // pred_region
        %s293 = ssub.s32 %s21, 1
        %s294 = sand.u32 %s34, 1
        %s295 = scalar_lea.sflag [#allocation3], %s294
        %s296 = sand.u32 %s34, 1
        %s297 = smul.addr %s296, 8
        %s298 = scalar_lea.vmem [#allocation2], %s297
        // Predicated region
        $region49: #{tpu_custom_call.1} parent=47 // pred_check
          %p299 = pneg %p47
        $region50: #{tpu_custom_call.1} parent=47 // pred_check_branch
          %301 = sbr.rel (%p299) target = $region52
        $region51: #{tpu_custom_call.1} parent=47 // pred_region
          %302 = dma.done %s295, 128
        $region52: #{tpu_custom_call.1} parent=47 // pred_fallthru
          _
        // Predicated region
        $region53: #{tpu_custom_call.1} parent=47 // pred_check
          %p303 = pneg %p68
        $region54: #{tpu_custom_call.1} parent=47 // pred_check_branch
          %305 = sbr.rel (%p303) target = $region56
        $region55: #{tpu_custom_call.1} parent=47 // pred_region
          %306 = dma.done [#allocation6], 1536
        $region56: #{tpu_custom_call.1} parent=47 // pred_fallthru
          _
        // Predicated region
        $region57: #{tpu_custom_call.1} parent=47 // pred_check
          %p307 = pneg %p110
        $region58: #{tpu_custom_call.1} parent=47 // pred_check_branch
          %309 = sbr.rel (%p307) target = $region60
        $region59: #{tpu_custom_call.1} parent=47 // pred_region
          %310 = dma.done [#allocation6], 3072
        $region60: #{tpu_custom_call.1} parent=47 // pred_fallthru
          _
        // Predicated region
        $region61: #{tpu_custom_call.1} parent=47 // pred_check
          %p311 = pneg %p152
        $region62: #{tpu_custom_call.1} parent=47 // pred_check_branch
          %313 = sbr.rel (%p311) target = $region64
        $region63: #{tpu_custom_call.1} parent=47 // pred_region
          %314 = dma.done [#allocation9], 512
        $region64: #{tpu_custom_call.1} parent=47 // pred_fallthru
          _
        %s315 = sand.u32 %s34, 1
        %s316 = scalar_lea.sflag [#allocation3], %s315
        %s317 = sand.u32 %s34, 1
        %s318 = smul.addr %s317, 8
        %s319 = scalar_lea.vmem [#allocation2], %s318
        %p320 = pneg %p47
        %p321 = pneg %p44
        %p322 = pneg %p68
        %p323 = pneg %p65
        %p324 = pneg %p89
        %p325 = pneg %p86
        %p326 = pneg %p110
        %p327 = pneg %p107
        %p328 = pneg %p131
        %p329 = pneg %p128
        %p330 = pneg %p152
        %p331 = pneg %p149
        %p332 = pneg %p173
        %p333 = pneg %p170
        %p334 = pneg %p199
        %p335 = pneg %p196
        %s336 = sand.u32 %s186, 1
        %s337 = scalar_lea.sflag [#allocation4], %s336
        %s338 = sand.u32 %s186, 1
        %s339 = smul.addr %s338, 16
        %s340 = scalar_lea.vmem [#allocation10], %s339
        %v342 = vld [vmem:[%s298] sm:$0xf]
        %v343 = vld [vmem:[%s298 + $0x4] sm:$0xf]
        %v344 = vld [vmem:[#allocation5] sm:$0xff]
        %v345 = vld [vmem:[#allocation5 + $0x8] sm:$0xf]
        %v346 = vld [vmem:[#allocation5 + $0xc] sm:$0xff]
        %v347 = vld [vmem:[#allocation5 + $0x14] sm:$0xf]
        %v348 = vld [vmem:[#allocation5 + $0x18] sm:$0xff]
        %v349 = vld [vmem:[#allocation5 + $0x20] sm:$0xf]
        %v350 = vld [vmem:[#allocation5 + $0x24] sm:$0xff]
        %v351 = vld [vmem:[#allocation5 + $0x2c] sm:$0xf]
        %v352 = vld [vmem:[#allocation5 + $0x30] sm:$0xff]
        %v353 = vld [vmem:[#allocation5 + $0x38] sm:$0xf]
        %v354 = vld [vmem:[#allocation5 + $0x3c] sm:$0xff]
        %v355 = vld [vmem:[#allocation5 + $0x44] sm:$0xf]
        %v356 = vld [vmem:[#allocation5 + $0x48] sm:$0xff]
        %v357 = vld [vmem:[#allocation5 + $0x50] sm:$0xf]
        %v358 = vld [vmem:[#allocation5 + $0x54] sm:$0xff]
        %v359 = vld [vmem:[#allocation5 + $0x5c] sm:$0xf]
        %v362 = vunpack.c.l.b16 %v342
        %v363 = vunpack.c.l.b16 %v343
        %v364 = vpack.c.b16 %v363, %v362
        %v381 = vunpack.c.l.b16 %v344
        %v382 = vunpack.c.h.b16 %v344
        %v383 = vunpack.c.l.b16 %v345
        %v384 = vunpack.c.l.b16 %v346
        %v385 = vunpack.c.h.b16 %v346
        %v386 = vunpack.c.l.b16 %v347
        %v387 = vunpack.c.l.b16 %v348
        %v388 = vunpack.c.h.b16 %v348
        %v389 = vunpack.c.l.b16 %v349
        %v390 = vunpack.c.l.b16 %v350
        %v391 = vunpack.c.h.b16 %v350
        %v392 = vunpack.c.l.b16 %v351
        %v393 = vunpack.c.l.b16 %v352
        %v394 = vunpack.c.h.b16 %v352
        %v395 = vunpack.c.l.b16 %v353
        %v396 = vunpack.c.l.b16 %v354
        %v397 = vunpack.c.h.b16 %v354
        %v398 = vunpack.c.l.b16 %v355
        %v399 = vunpack.c.l.b16 %v356
        %v400 = vunpack.c.h.b16 %v356
        %v401 = vunpack.c.l.b16 %v357
        %v402 = vunpack.c.l.b16 %v358
        %v403 = vunpack.c.h.b16 %v358
        %v404 = vunpack.c.l.b16 %v359
        %v405 = vpack.c.b16 %v384, %v381
        %v406 = vpack.c.b16 %v385, %v382
        %v407 = vpack.c.b16 %v386, %v383
        %v408 = vpack.c.b16 %v390, %v387
        %v409 = vpack.c.b16 %v391, %v388
        %v410 = vpack.c.b16 %v392, %v389
        %v411 = vpack.c.b16 %v396, %v393
        %v412 = vpack.c.b16 %v397, %v394
        %v413 = vpack.c.b16 %v398, %v395
        %v414 = vpack.c.b16 %v402, %v399
        %v415 = vpack.c.b16 %v403, %v400
        %v416 = vpack.c.b16 %v404, %v401
        %vm429 = vcmask 523264
        %v431 = vsel %vm429, %v364, 0
        %433 = vmatprep.subr.bf16.mxu0 %v406
        %434 = vmatpush1.bf16.msra.mxu0 %v405
        %435 = vmatprep.subr.bf16.mxu0 %v409
        %436 = vmatpush1.bf16.msra.mxu0 %v408
        %437 = vmatprep.subr.bf16.mxu0 %v412
        %438 = vmatpush1.bf16.msra.mxu0 %v411
        %439 = vmatprep.subr.bf16.mxu0 %v415
        %440 = vmatpush1.bf16.msra.mxu0 %v414
        %441 = vmatprep.subr.bf16.mxu0 0
        %442 = vmatpush1.bf16.msra.mxu0 0
        %443 = vmatprep.subr.bf16.mxu0 0
        %444 = vmatpush1.bf16.msra.mxu0 0
        %445 = vmatprep.subr.bf16.mxu0 0
        %446 = vmatpush1.bf16.msra.mxu0 0
        %447 = vmatprep.subr.bf16.mxu0 0
        %448 = vmatpush1.bf16.msra.mxu0 0
        %449 = vmatprep.subr.bf16.mxu0 0
        %450 = vmatpush1.bf16.msra.mxu0 0
        %451 = vmatprep.subr.bf16.mxu0 0
        %452 = vmatpush1.bf16.msra.mxu0 0
        %453 = vmatprep.subr.bf16.mxu0 0
        %454 = vmatpush1.bf16.msra.mxu0 0
        %455 = vmatprep.subr.bf16.mxu0 0
        %456 = vmatpush1.bf16.msra.mxu0 0
        %457 = vmatprep.subr.bf16.mxu0 0
        %458 = vmatpush1.bf16.msra.mxu0 0
        %459 = vmatprep.subr.bf16.mxu0 0
        %460 = vmatpush1.bf16.msra.mxu0 0
        %461 = vmatprep.subr.bf16.mxu0 0
        %462 = vmatpush1.bf16.msra.mxu0 0
        %463 = vmatprep.subr.bf16.mxu0 0
        %464 = vmatpush1.bf16.msra.mxu0 0
        %465 = vmatprep.mubr.bf16.mxu0 0
        %466 = vmatmul.mubr.bf16.gmra.mrb[0].mxu0 %v431
        %v467 = vpop.f32.mrb[0].mxu0
        %v468 = vadd.f32 0.0, %v467
        %v469 = vpop.f32.mrb[0].mxu0
        %v470 = vadd.f32 0.0, %v469
        %v471 = vpop.f32.mrb[0].mxu0
        %v472 = vadd.f32 0.0, %v471
        %v473 = vpop.f32.mrb[0].mxu0
        %v474 = vadd.f32 0.0, %v473
        %475 = vdwg.mxu0
        %476 = vmatprep.subr.bf16.mxu0 0
        %477 = vmatpush1.bf16.msra.mxu0 %v407
        %478 = vmatprep.subr.bf16.mxu0 0
        %479 = vmatpush1.bf16.msra.mxu0 %v410
        %480 = vmatprep.subr.bf16.mxu0 0
        %481 = vmatpush1.bf16.msra.mxu0 %v413
        %482 = vmatprep.subr.bf16.mxu0 0
        %483 = vmatpush1.bf16.msra.mxu0 %v416
        %484 = vmatprep.subr.bf16.mxu0 0
        %485 = vmatpush1.bf16.msra.mxu0 0
        %486 = vmatprep.subr.bf16.mxu0 0
        %487 = vmatpush1.bf16.msra.mxu0 0
        %488 = vmatprep.subr.bf16.mxu0 0
        %489 = vmatpush1.bf16.msra.mxu0 0
        %490 = vmatprep.subr.bf16.mxu0 0
        %491 = vmatpush1.bf16.msra.mxu0 0
        %492 = vmatprep.subr.bf16.mxu0 0
        %493 = vmatpush1.bf16.msra.mxu0 0
        %494 = vmatprep.subr.bf16.mxu0 0
        %495 = vmatpush1.bf16.msra.mxu0 0
        %496 = vmatprep.subr.bf16.mxu0 0
        %497 = vmatpush1.bf16.msra.mxu0 0
        %498 = vmatprep.subr.bf16.mxu0 0
        %499 = vmatpush1.bf16.msra.mxu0 0
        %500 = vmatprep.subr.bf16.mxu0 0
        %501 = vmatpush1.bf16.msra.mxu0 0
        %502 = vmatprep.subr.bf16.mxu0 0
        %503 = vmatpush1.bf16.msra.mxu0 0
        %504 = vmatprep.subr.bf16.mxu0 0
        %505 = vmatpush1.bf16.msra.mxu0 0
        %506 = vmatprep.subr.bf16.mxu0 0
        %507 = vmatpush1.bf16.msra.mxu0 0
        %508 = vmatprep.mubr.bf16.mxu0 0
        %509 = vmatmul.mubr.bf16.gmra.mrb[0].mxu0 %v431
        %v510 = vpop.f32.mrb[0].mxu0
        %v511 = vadd.f32 0.0, %v510
        %v512 = vpop.f32.mrb[0].mxu0
        %v513 = vpop.f32.mrb[0].mxu0
        %v514 = vadd.f32 0.0, %v513
        %v515 = vpop.f32.mrb[0].mxu0
        %516 = vdwg.mxu0
        %vm519 = vcmask 1040384
        %v520 = vrot.slane %v468, 7
        %v521 = vrot.slane %v472, 7
        %v522 = vsel %vm519, %v520, %v521
        %v525 = vsel %vm519, 0.0, %v520
        %v526 = vadd.f32 %v470, %v525
        %v527 = vadd.f32 %v474, %v522
        %vm530 = vcmask 1046528
        %v531 = vrot.slane %v511, 1
        %v532 = vrot.slane %v514, 1
        %v533 = vsel %vm530, %v531, %v532
        %v536 = vsel %vm530, %v532, 0.0
        %v537 = vadd.f32 %v526, %v533
        %v538 = vadd.f32 %v527, %v536
        %v539 = vld [vmem:[%s2] sm:$0x1]
        %v541 = vlaneseq
        %v542 = vshrl.u32 %v541, 7
        %v543 = vsub.s32 0, %v542
        %v544 = vrot.slane %v539, %v543
        %v546 = vadd.f32 %v537, %v544
        %v547 = vadd.f32 %v538, %v544
        %v548 = vmax.f32 %v546, 0.0
        %v549 = vmax.f32 %v547, 0.0
        %v550 = vpack.c.bf16 %v549, %v548
        %v551 = vld [vmem:[#allocation7] sm:$0xff]
        %v552 = vld [vmem:[#allocation7 + $0x8] sm:$0xf]
        %v553 = vld [vmem:[#allocation7 + $0xc] sm:$0xff]
        %v554 = vld [vmem:[#allocation7 + $0x14] sm:$0xf]
        %v555 = vld [vmem:[#allocation7 + $0x18] sm:$0xff]
        %v556 = vld [vmem:[#allocation7 + $0x20] sm:$0xf]
        %v557 = vld [vmem:[#allocation7 + $0x24] sm:$0xff]
        %v558 = vld [vmem:[#allocation7 + $0x2c] sm:$0xf]
        %v559 = vld [vmem:[#allocation7 + $0x30] sm:$0xff]
        %v560 = vld [vmem:[#allocation7 + $0x38] sm:$0xf]
        %v561 = vld [vmem:[#allocation7 + $0x3c] sm:$0xff]
        %v562 = vld [vmem:[#allocation7 + $0x44] sm:$0xf]
        %v563 = vld [vmem:[#allocation7 + $0x48] sm:$0xff]
        %v564 = vld [vmem:[#allocation7 + $0x50] sm:$0xf]
        %v565 = vld [vmem:[#allocation7 + $0x54] sm:$0xff]
        %v566 = vld [vmem:[#allocation7 + $0x5c] sm:$0xf]
        %v567 = vld [vmem:[#allocation7 + $0x60] sm:$0xff]
        %v568 = vld [vmem:[#allocation7 + $0x68] sm:$0xf]
        %v569 = vld [vmem:[#allocation7 + $0x6c] sm:$0xff]
        %v570 = vld [vmem:[#allocation7 + $0x74] sm:$0xf]
        %v571 = vld [vmem:[#allocation7 + $0x78] sm:$0xff]
        %v572 = vld [vmem:[#allocation7 + $0x80] sm:$0xf]
        %v573 = vld [vmem:[#allocation7 + $0x84] sm:$0xff]
        %v574 = vld [vmem:[#allocation7 + $0x8c] sm:$0xf]
        %v575 = vld [vmem:[#allocation7 + $0x90] sm:$0xff]
        %v576 = vld [vmem:[#allocation7 + $0x98] sm:$0xf]
        %v577 = vld [vmem:[#allocation7 + $0x9c] sm:$0xff]
        %v578 = vld [vmem:[#allocation7 + $0xa4] sm:$0xf]
        %v579 = vld [vmem:[#allocation7 + $0xa8] sm:$0xff]
        %v580 = vld [vmem:[#allocation7 + $0xb0] sm:$0xf]
        %v581 = vld [vmem:[#allocation7 + $0xb4] sm:$0xff]
        %v582 = vld [vmem:[#allocation7 + $0xbc] sm:$0xf]
        %v615 = vunpack.c.l.b16 %v551
        %v616 = vunpack.c.h.b16 %v551
        %v617 = vunpack.c.l.b16 %v552
        %v618 = vunpack.c.l.b16 %v553
        %v619 = vunpack.c.h.b16 %v553
        %v620 = vunpack.c.l.b16 %v554
        %v621 = vunpack.c.l.b16 %v555
        %v622 = vunpack.c.h.b16 %v555
        %v623 = vunpack.c.l.b16 %v556
        %v624 = vunpack.c.l.b16 %v557
        %v625 = vunpack.c.h.b16 %v557
        %v626 = vunpack.c.l.b16 %v558
        %v627 = vunpack.c.l.b16 %v559
        %v628 = vunpack.c.h.b16 %v559
        %v629 = vunpack.c.l.b16 %v560
        %v630 = vunpack.c.l.b16 %v561
        %v631 = vunpack.c.h.b16 %v561
        %v632 = vunpack.c.l.b16 %v562
        %v633 = vunpack.c.l.b16 %v563
        %v634 = vunpack.c.h.b16 %v563
        %v635 = vunpack.c.l.b16 %v564
        %v636 = vunpack.c.l.b16 %v565
        %v637 = vunpack.c.h.b16 %v565
        %v638 = vunpack.c.l.b16 %v566
        %v639 = vunpack.c.l.b16 %v567
        %v640 = vunpack.c.h.b16 %v567
        %v641 = vunpack.c.l.b16 %v568
        %v642 = vunpack.c.l.b16 %v569
        %v643 = vunpack.c.h.b16 %v569
        %v644 = vunpack.c.l.b16 %v570
        %v645 = vunpack.c.l.b16 %v571
        %v646 = vunpack.c.h.b16 %v571
        %v647 = vunpack.c.l.b16 %v572
        %v648 = vunpack.c.l.b16 %v573
        %v649 = vunpack.c.h.b16 %v573
        %v650 = vunpack.c.l.b16 %v574
        %v651 = vunpack.c.l.b16 %v575
        %v652 = vunpack.c.h.b16 %v575
        %v653 = vunpack.c.l.b16 %v576
        %v654 = vunpack.c.l.b16 %v577
        %v655 = vunpack.c.h.b16 %v577
        %v656 = vunpack.c.l.b16 %v578
        %v657 = vunpack.c.l.b16 %v579
        %v658 = vunpack.c.h.b16 %v579
        %v659 = vunpack.c.l.b16 %v580
        %v660 = vunpack.c.l.b16 %v581
        %v661 = vunpack.c.h.b16 %v581
        %v662 = vunpack.c.l.b16 %v582
        %v663 = vpack.c.b16 %v618, %v615
        %v664 = vpack.c.b16 %v619, %v616
        %v665 = vpack.c.b16 %v620, %v617
        %v666 = vpack.c.b16 %v624, %v621
        %v667 = vpack.c.b16 %v625, %v622
        %v668 = vpack.c.b16 %v626, %v623
        %v669 = vpack.c.b16 %v630, %v627
        %v670 = vpack.c.b16 %v631, %v628
        %v671 = vpack.c.b16 %v632, %v629
        %v672 = vpack.c.b16 %v636, %v633
        %v673 = vpack.c.b16 %v637, %v634
        %v674 = vpack.c.b16 %v638, %v635
        %v675 = vpack.c.b16 %v642, %v639
        %v676 = vpack.c.b16 %v643, %v640
        %v677 = vpack.c.b16 %v644, %v641
        %v678 = vpack.c.b16 %v648, %v645
        %v679 = vpack.c.b16 %v649, %v646
        %v680 = vpack.c.b16 %v650, %v647
        %v681 = vpack.c.b16 %v654, %v651
        %v682 = vpack.c.b16 %v655, %v652
        %v683 = vpack.c.b16 %v656, %v653
        %v684 = vpack.c.b16 %v660, %v657
        %v685 = vpack.c.b16 %v661, %v658
        %v686 = vpack.c.b16 %v662, %v659
        %711 = vmatprep.subr.bf16.mxu0 %v664
        %712 = vmatpush1.bf16.msra.mxu0 %v663
        %713 = vmatprep.subr.bf16.mxu0 %v667
        %714 = vmatpush1.bf16.msra.mxu0 %v666
        %715 = vmatprep.subr.bf16.mxu0 %v670
        %716 = vmatpush1.bf16.msra.mxu0 %v669
        %717 = vmatprep.subr.bf16.mxu0 %v673
        %718 = vmatpush1.bf16.msra.mxu0 %v672
        %719 = vmatprep.subr.bf16.mxu0 %v676
        %720 = vmatpush1.bf16.msra.mxu0 %v675
        %721 = vmatprep.subr.bf16.mxu0 %v679
        %722 = vmatpush1.bf16.msra.mxu0 %v678
        %723 = vmatprep.subr.bf16.mxu0 %v682
        %724 = vmatpush1.bf16.msra.mxu0 %v681
        %725 = vmatprep.subr.bf16.mxu0 %v685
        %726 = vmatpush1.bf16.msra.mxu0 %v684
        %727 = vmatprep.subr.bf16.mxu0 0
        %728 = vmatpush1.bf16.msra.mxu0 0
        %729 = vmatprep.subr.bf16.mxu0 0
        %730 = vmatpush1.bf16.msra.mxu0 0
        %731 = vmatprep.subr.bf16.mxu0 0
        %732 = vmatpush1.bf16.msra.mxu0 0
        %733 = vmatprep.subr.bf16.mxu0 0
        %734 = vmatpush1.bf16.msra.mxu0 0
        %735 = vmatprep.subr.bf16.mxu0 0
        %736 = vmatpush1.bf16.msra.mxu0 0
        %737 = vmatprep.subr.bf16.mxu0 0
        %738 = vmatpush1.bf16.msra.mxu0 0
        %739 = vmatprep.subr.bf16.mxu0 0
        %740 = vmatpush1.bf16.msra.mxu0 0
        %741 = vmatprep.subr.bf16.mxu0 0
        %742 = vmatpush1.bf16.msra.mxu0 0
        %743 = vmatprep.mubr.bf16.mxu0 0
        %744 = vmatmul.mubr.bf16.gmra.mrb[0].mxu0 %v550
        %v745 = vpop.f32.mrb[0].mxu0
        %v746 = vadd.f32 0.0, %v745
        %v747 = vpop.f32.mrb[0].mxu0
        %v748 = vadd.f32 0.0, %v747
        %v749 = vpop.f32.mrb[0].mxu0
        %v750 = vadd.f32 0.0, %v749
        %v751 = vpop.f32.mrb[0].mxu0
        %v752 = vadd.f32 0.0, %v751
        %753 = vdwg.mxu0
        %754 = vmatprep.subr.bf16.mxu0 0
        %755 = vmatpush1.bf16.msra.mxu0 %v665
        %756 = vmatprep.subr.bf16.mxu0 0
        %757 = vmatpush1.bf16.msra.mxu0 %v668
        %758 = vmatprep.subr.bf16.mxu0 0
        %759 = vmatpush1.bf16.msra.mxu0 %v671
        %760 = vmatprep.subr.bf16.mxu0 0
        %761 = vmatpush1.bf16.msra.mxu0 %v674
        %762 = vmatprep.subr.bf16.mxu0 0
        %763 = vmatpush1.bf16.msra.mxu0 %v677
        %764 = vmatprep.subr.bf16.mxu0 0
        %765 = vmatpush1.bf16.msra.mxu0 %v680
        %766 = vmatprep.subr.bf16.mxu0 0
        %767 = vmatpush1.bf16.msra.mxu0 %v683
        %768 = vmatprep.subr.bf16.mxu0 0
        %769 = vmatpush1.bf16.msra.mxu0 %v686
        %770 = vmatprep.subr.bf16.mxu0 0
        %771 = vmatpush1.bf16.msra.mxu0 0
        %772 = vmatprep.subr.bf16.mxu0 0
        %773 = vmatpush1.bf16.msra.mxu0 0
        %774 = vmatprep.subr.bf16.mxu0 0
        %775 = vmatpush1.bf16.msra.mxu0 0
        %776 = vmatprep.subr.bf16.mxu0 0
        %777 = vmatpush1.bf16.msra.mxu0 0
        %778 = vmatprep.subr.bf16.mxu0 0
        %779 = vmatpush1.bf16.msra.mxu0 0
        %780 = vmatprep.subr.bf16.mxu0 0
        %781 = vmatpush1.bf16.msra.mxu0 0
        %782 = vmatprep.subr.bf16.mxu0 0
        %783 = vmatpush1.bf16.msra.mxu0 0
        %784 = vmatprep.subr.bf16.mxu0 0
        %785 = vmatpush1.bf16.msra.mxu0 0
        %786 = vmatprep.mubr.bf16.mxu0 0
        %787 = vmatmul.mubr.bf16.gmra.mrb[0].mxu0 %v550
        %v788 = vpop.f32.mrb[0].mxu0
        %v789 = vadd.f32 0.0, %v788
        %v790 = vpop.f32.mrb[0].mxu0
        %v791 = vpop.f32.mrb[0].mxu0
        %v792 = vadd.f32 0.0, %v791
        %v793 = vpop.f32.mrb[0].mxu0
        %794 = vdwg.mxu0
        %v797 = vrot.slane %v746, 7
        %v798 = vrot.slane %v750, 7
        %v799 = vsel %vm519, %v797, %v798
        %v802 = vsel %vm519, 0.0, %v797
        %v803 = vadd.f32 %v748, %v802
        %v804 = vadd.f32 %v752, %v799
        %v807 = vrot.slane %v789, 1
        %v808 = vrot.slane %v792, 1
        %v809 = vsel %vm530, %v807, %v808
        %v812 = vsel %vm530, %v808, 0.0
        %v813 = vadd.f32 %v803, %v809
        %v814 = vadd.f32 %v804, %v812
        %v815 = vld [vmem:[%s4] sm:$0x1]
        %v817 = vlaneseq
        %v818 = vshrl.u32 %v817, 7
        %v819 = vsub.s32 0, %v818
        %v820 = vrot.slane %v815, %v819
        %v822 = vadd.f32 %v813, %v820
        %v823 = vadd.f32 %v814, %v820
        %v824 = vld [vmem:[#allocation8] sm:$0xf]
        %v825 = vld [vmem:[#allocation8 + $0x4] sm:$0xf]
        %v826 = vld [vmem:[#allocation8 + $0x8] sm:$0xf]
        %v827 = vld [vmem:[#allocation8 + $0xc] sm:$0xf]
        %v828 = vld [vmem:[#allocation8 + $0x10] sm:$0xf]
        %v829 = vld [vmem:[#allocation8 + $0x14] sm:$0xf]
        %v830 = vld [vmem:[#allocation8 + $0x18] sm:$0xf]
        %v831 = vld [vmem:[#allocation8 + $0x1c] sm:$0xf]
        %v832 = vld [vmem:[%s6] sm:$0x1]
        %v834 = vlaneseq
        %v835 = vshrl.u32 %v834, 7
        %v836 = vsub.s32 0, %v835
        %v837 = vrot.slane %v832, %v836
        %v847 = vunpack.c.l.b16 %v824
        %v848 = vunpack.c.l.b16 %v825
        %v849 = vunpack.c.l.b16 %v826
        %v850 = vunpack.c.l.b16 %v827
        %v851 = vunpack.c.l.b16 %v828
        %v852 = vunpack.c.l.b16 %v829
        %v853 = vunpack.c.l.b16 %v830
        %v854 = vunpack.c.l.b16 %v831
        %v855 = vpack.c.b16 %v848, %v847
        %v856 = vpack.c.b16 %v850, %v849
        %v857 = vpack.c.b16 %v852, %v851
        %v858 = vpack.c.b16 %v854, %v853
        %863 = vmatprep.subr.bf16.mxu0 0
        %864 = vmatpush1.bf16.msra.mxu0 %v855
        %865 = vmatprep.subr.bf16.mxu0 0
        %866 = vmatpush1.bf16.msra.mxu0 %v856
        %867 = vmatprep.subr.bf16.mxu0 0
        %868 = vmatpush1.bf16.msra.mxu0 %v857
        %869 = vmatprep.subr.bf16.mxu0 0
        %870 = vmatpush1.bf16.msra.mxu0 %v858
        %871 = vmatprep.subr.bf16.mxu0 0
        %872 = vmatpush1.bf16.msra.mxu0 0
        %873 = vmatprep.subr.bf16.mxu0 0
        %874 = vmatpush1.bf16.msra.mxu0 0
        %875 = vmatprep.subr.bf16.mxu0 0
        %876 = vmatpush1.bf16.msra.mxu0 0
        %877 = vmatprep.subr.bf16.mxu0 0
        %878 = vmatpush1.bf16.msra.mxu0 0
        %879 = vmatprep.subr.bf16.mxu0 0
        %880 = vmatpush1.bf16.msra.mxu0 0
        %881 = vmatprep.subr.bf16.mxu0 0
        %882 = vmatpush1.bf16.msra.mxu0 0
        %883 = vmatprep.subr.bf16.mxu0 0
        %884 = vmatpush1.bf16.msra.mxu0 0
        %885 = vmatprep.subr.bf16.mxu0 0
        %886 = vmatpush1.bf16.msra.mxu0 0
        %887 = vmatprep.subr.bf16.mxu0 0
        %888 = vmatpush1.bf16.msra.mxu0 0
        %889 = vmatprep.subr.bf16.mxu0 0
        %890 = vmatpush1.bf16.msra.mxu0 0
        %891 = vmatprep.subr.bf16.mxu0 0
        %892 = vmatpush1.bf16.msra.mxu0 0
        %893 = vmatprep.subr.bf16.mxu0 0
        %894 = vmatpush1.bf16.msra.mxu0 0
        %895 = vmatprep.mubr.bf16.mxu0 0
        %896 = vmatmul.mubr.bf16.gmra.mrb[0].mxu0 %v431
        %v897 = vpop.f32.mrb[0].mxu0
        %v898 = vadd.f32 %v837, %v897
        %v899 = vpop.f32.mrb[0].mxu0
        %v900 = vpop.f32.mrb[0].mxu0
        %v901 = vadd.f32 %v837, %v900
        %v902 = vpop.f32.mrb[0].mxu0
        %903 = vdwg.mxu0
        %v904 = vadd.f32 %v822, %v898
        %v905 = vadd.f32 %v823, %v901
        %v906 = vmax.f32 %v904, 0.0
        %v907 = vmax.f32 %v905, 0.0
        %908 = vst [vmem:[%s340] sm:$0xff] %v906
        %909 = vst [vmem:[%s340 + $0x8] sm:$0xff] %v907
        %s910 = sand.u32 %s186, 1
        %s911 = scalar_lea.sflag [#allocation4], %s910
        %s912 = sand.u32 %s186, 1
        %s913 = smul.addr %s912, 16
        %s914 = scalar_lea.vmem [#allocation10], %s913
        // Predicated region
        $region65: #{tpu_custom_call.1} parent=47 // pred_check
          %p915 = pneg %p196
        $region66: #{tpu_custom_call.1} parent=47 // pred_check_branch
          %917 = sbr.rel (%p915) target = $region68
        $region67: #{tpu_custom_call.1} parent=47 // pred_region
          %s919 = ssub.s32 256, 256
          %920 = vsyncadd %s911, %s919
          %s921 = smul.addr %s26, 2
          %s922 = smul.addr %s921, 128
          %s923 = scalar_lea.hbm %s7, %s922
          %s924 = sshll.u32 %s914, 4
          %s925 = int_to_ptr.vmem [resolvable:$true] %s924
          %930 = dma.vmem_to_hbm [thread:$0]  %s925, 256, %s923, %s911, 128, 128, 8
        $region68: #{tpu_custom_call.1} parent=47 // pred_fallthru
          _
      $region48: #{tpu_custom_call.1} parent=5 // pred_fallthru
        _
      %p931 = scmp.le.s32.totalorder 2, %s21
      // Predicated region
      $region69: #{tpu_custom_call.1} parent=5 // pred_check
        %p932 = pneg %p931
      $region70: #{tpu_custom_call.1} parent=5 // pred_check_branch
        %934 = sbr.rel (%p932) target = $region72
      $region71: #{tpu_custom_call.1} parent=5 // pred_region
        %s935 = ssub.s32 %s21, 2
        // Predicated region
        $region73: #{tpu_custom_call.1} parent=71 // pred_check
          %p936 = pneg %p202
        $region74: #{tpu_custom_call.1} parent=71 // pred_check_branch
          %938 = sbr.rel (%p936) target = $region76
        $region75: #{tpu_custom_call.1} parent=71 // pred_region
          %s939 = sand.u32 %s187, 1
          %s940 = scalar_lea.sflag [#allocation4], %s939
          %s941 = sand.u32 %s187, 1
          %s942 = smul.addr %s941, 16
          %s943 = scalar_lea.vmem [#allocation10], %s942
          %944 = dma.done %s940, 256
        $region76: #{tpu_custom_call.1} parent=71 // pred_fallthru
          _
      $region72: #{tpu_custom_call.1} parent=5 // pred_fallthru
        _
    $region6: #{tpu_custom_call.1} parent=1 // loop_footer
      %s25 = sadd.s32 1, %s21
    $region7: #{tpu_custom_call.1} parent=1 // loop_footer_branch
      %20 = sbr.rel target = $region3
    $region8: #{tpu_custom_call.1} parent=1 // loop_exit
      _
    %945 = vsyncpa [#allocation3], 1
    %s946 = scalar_lea.sflag [#allocation3], 1
    %947 = vsyncpa %s946, 1
    %948 = vsyncpa [#allocation6], 1
    %949 = vsyncpa [#allocation9], 1
    %950 = vsyncpa [#allocation4], 1
    %s951 = scalar_lea.sflag [#allocation4], 1
    %952 = vsyncpa %s951, 1

</llo_original>
